<compile_context>
chip_gen: v7x
topology: tpu7x:2x2x1
jax: 0.10.0
libtpu: 0.0.40
codegen_flags: <defaults>
</compile_context>

<pallas_src>
import functools

import jax
import jax.numpy as jnp
import numpy as np
from jax import lax
from jax.experimental import pallas as pl
from jax.experimental.pallas import tpu as pltpu


def _round_up(x, m):
    return ((x + m - 1) // m) * m


def _embed_kernel(users_sm, items_sm,            # scalar-prefetch index vectors (SMEM)
                  user_tbl_ref, item_tbl_ref,    # VMEM-resident fused tables
                  out_ref,                       # (TB, OW) fused, lane-dense output slab
                  u_scr, i_scr,                  # (TB, uw) / (TB, iw) VMEM gather scratch
                  *, tb, user_embed, item_embed, uw, iw, out_width):
    base = pl.program_id(0) * tb

    # VMEM-local row gather: one fused user row + one fused item row per batch element.
    def gather_row(b, carry):
        u = users_sm[base + b]
        it = items_sm[base + b]
        u_scr[pl.ds(b, 1), :] = user_tbl_ref[pl.ds(u, 1), :]
        i_scr[pl.ds(b, 1), :] = item_tbl_ref[pl.ds(it, 1), :]
        return carry

    lax.fori_loop(0, tb, gather_row, 0, unroll=(tb <= 16))

    urows = u_scr[...]                            # (TB, uw)  = [user_emb | cross_user]
    irows = i_scr[...]                            # (TB, iw)  = [item_emb | cross_item]

    # cross = (cross_users * cross_items).sum(-1, keepdims=True), batched over the tile.
    cross = jnp.sum(urows[:, user_embed:] * irows[:, item_embed:],
                    axis=-1, keepdims=True)       # (TB, 1), f32 accumulation

    # Assemble one lane-dense slab; single full-block writeback DMA per tile.
    out_ref[:, :uw] = urows
    out_ref[:, uw:uw + iw] = irows
    out_ref[:, uw + iw:uw + iw + 1] = cross
    pad = out_width - (uw + iw + 1)
    if pad > 0:                                   # static Python branch
        out_ref[:, uw + iw + 1:] = jnp.zeros((tb, pad), jnp.float32)


def fuse_embedding_tables(user_table, user_x_table, item_table, item_x_table):
    """One-time fusion of plain + crossed tables along the embedding axis."""
    user_fused = jnp.concatenate([user_table, user_x_table], axis=1)  # (cnt_users, uw)
    item_fused = jnp.concatenate([item_table, item_x_table], axis=1)  # (cnt_items, iw)
    return user_fused, item_fused


def embed_model_forward(users, items, user_fused, item_fused,
                        user_embed, item_embed, crossed_embed, *, batch_tile=128):
    """users, items: int [B]. Returns the 5 outputs of EmbedModel.forward."""
    B = users.shape[0]
    cnt_users, uw = user_fused.shape
    cnt_items, iw = item_fused.shape
    assert uw == user_embed + crossed_embed and iw == item_embed + crossed_embed

    TB = min(batch_tile, _round_up(B, 8))         # full-sublane batch tile
    B_pad = _round_up(B, TB)
    OW = _round_up(uw + iw + 1, 128)              # lane-dense fused output width

    # Clamp so a bad index can never address outside the resident table.
    users_i = jnp.clip(users.astype(jnp.int32), 0, cnt_users - 1)
    items_i = jnp.clip(items.astype(jnp.int32), 0, cnt_items - 1)
    if B_pad != B:
        users_i = jnp.pad(users_i, (0, B_pad - B))
        items_i = jnp.pad(items_i, (0, B_pad - B))

    kernel = functools.partial(_embed_kernel, tb=TB, user_embed=user_embed,
                               item_embed=item_embed, uw=uw, iw=iw, out_width=OW)

    grid_spec = pltpu.PrefetchScalarGridSpec(
        num_scalar_prefetch=2,                    # users, items -> SMEM
        grid=(B_pad // TB,),
        in_specs=[
            # Full tables VMEM-resident; constant block index => loaded once, reused.
            pl.BlockSpec((cnt_users, uw), lambda i, u, it: (0, 0)),
            pl.BlockSpec((cnt_items, iw), lambda i, u, it: (0, 0)),
        ],
        out_specs=pl.BlockSpec((TB, OW), lambda i, u, it: (i, 0)),
        scratch_shapes=[pltpu.VMEM((TB, uw), jnp.float32),
                        pltpu.VMEM((TB, iw), jnp.float32)],
    )

    slab = pl.pallas_call(
        kernel,
        out_shape=jax.ShapeDtypeStruct((B_pad, OW), jnp.float32),
        grid_spec=grid_spec,
        # Batch tiles are independent; "parallel" is a safe hint (explicit CORE_PARALLEL /
        # core_map would be needed for real 2-TC sharding on v7x, not required here).
        compiler_params=pltpu.CompilerParams(dimension_semantics=("parallel",)),
    )(users_i, items_i, user_fused, item_fused)

    # Slice the fused slab back into the five EmbedModel outputs.
    slab = slab[:B]
    users_to_embed = slab[:, :user_embed]
    cross_users = slab[:, user_embed:uw]
    items_to_embed = slab[:, uw:uw + item_embed]
    cross_items = slab[:, uw + item_embed:uw + iw]
    cross = slab[:, uw + iw:uw + iw + 1]
    # Note: PyTorch's .squeeze() would additionally drop the batch dim when B == 1;
    # we keep the standard [B, D] layout.
    return users_to_embed, items_to_embed, cross_users, cross_items, cross


if __name__ == "__main__":
    # Module hyper-parameters (small, consistent with EmbedModel.__init__).
    cnt_users, cnt_items = 32, 64
    user_embed, item_embed, crossed_embed = 16, 32, 8
    B = 8

    key = jax.random.PRNGKey(0)
    k1, k2, k3, k4, k5, k6 = jax.random.split(key, 6)

    # nn.Embedding default init: weights ~ N(0, 1).
    user_table = jax.random.normal(k1, (cnt_users, user_embed), jnp.float32)
    item_table = jax.random.normal(k2, (cnt_items, item_embed), jnp.float32)
    user_x_table = jax.random.normal(k3, (cnt_users, crossed_embed), jnp.float32)
    item_x_table = jax.random.normal(k4, (cnt_items, crossed_embed), jnp.float32)

    users = jax.random.randint(k5, (B,), 0, cnt_users, jnp.int32)
    items = jax.random.randint(k6, (B,), 0, cnt_items, jnp.int32)

    # One-time table fusion (would be done at model-load time in real usage).
    user_fused, item_fused = fuse_embedding_tables(
        user_table, user_x_table, item_table, item_x_table)

    outs = embed_model_forward(users, items, user_fused, item_fused,
                               user_embed, item_embed, crossed_embed)
    outs = jax.block_until_ready(outs)

    # Pure-JAX reference check (embedding take + dot product).
    ref_u = user_table[users]
    ref_i = item_table[items]
    ref_cu = user_x_table[users]
    ref_ci = item_x_table[items]
    ref_cross = jnp.sum(ref_cu * ref_ci, axis=-1, keepdims=True)
    for got, ref in zip(outs, (ref_u, ref_i, ref_cu, ref_ci, ref_cross)):
        np.testing.assert_allclose(np.asarray(got), np.asarray(ref),
                                   rtol=1e-5, atol=1e-5)

    print("KERNEL_OK")
</pallas_src>

<mosaic_0001>
module attributes {stable_mosaic.version = 11 : i64} {
  func.func @_embed_kernel(%arg0: i32, %arg1: memref<8xi32, #tpu.memory_space<smem>>, %arg2: memref<8xi32, #tpu.memory_space<smem>>, %arg3: memref<32x24xf32, #tpu.memory_space<vmem>>, %arg4: memref<64x40xf32, #tpu.memory_space<vmem>>, %arg5: memref<8x128xf32, #tpu.memory_space<vmem>>, %arg6: memref<8x24xf32, #tpu.memory_space<vmem>>, %arg7: memref<8x40xf32, #tpu.memory_space<vmem>>) attributes {dimension_semantics = [#tpu.dimension_semantics<parallel>], iteration_bounds = array<i64: 1>, scalar_prefetch = 2 : i64, scratch_operands = 2 : i64, tpu.core_type = #tpu.core_type<tc>, window_params = [{pipeline_mode = #tpu.pipeline_mode<synchronous>, transform_indices = @transform_0, window_bounds = array<i64: 32, 24>}, {pipeline_mode = #tpu.pipeline_mode<synchronous>, transform_indices = @transform_1, window_bounds = array<i64: 64, 40>}, {transform_indices = @transform_2, window_bounds = array<i64: 8, 128>}]} {
    %c8_i32 = arith.constant 8 : i32
    %0 = arith.muli %arg0, %c8_i32 : i32
    %c0_i32 = arith.constant 0 : i32
    %1 = arith.addi %0, %c0_i32 : i32
    %2 = arith.index_cast %1 : i32 to index
    %3 = memref.load %arg1[%2] : memref<8xi32, #tpu.memory_space<smem>>
    %4 = arith.addi %0, %c0_i32 : i32
    %5 = arith.index_cast %4 : i32 to index
    %6 = memref.load %arg2[%5] : memref<8xi32, #tpu.memory_space<smem>>
    %7 = arith.index_cast %3 : i32 to index
    %c0 = arith.constant 0 : index
    %8 = vector.load %arg3[%7, %c0] : memref<32x24xf32, #tpu.memory_space<vmem>>, vector<1x24xf32>
    %9 = arith.index_cast %c0_i32 : i32 to index
    %c0_0 = arith.constant 0 : index
    %10 = vector.load %arg6[%9, %c0_0] : memref<8x24xf32, #tpu.memory_space<vmem>>, vector<1x24xf32>
    tpu.vector_store %arg6[%9, %c0_0], %8 {strides = array<i32>} : memref<8x24xf32, #tpu.memory_space<vmem>>, vector<1x24xf32>,
    %11 = arith.index_cast %6 : i32 to index
    %c0_1 = arith.constant 0 : index
    %12 = vector.load %arg4[%11, %c0_1] : memref<64x40xf32, #tpu.memory_space<vmem>>, vector<1x40xf32>
    %13 = arith.index_cast %c0_i32 : i32 to index
    %c0_2 = arith.constant 0 : index
    %14 = vector.load %arg7[%13, %c0_2] : memref<8x40xf32, #tpu.memory_space<vmem>>, vector<1x40xf32>
    tpu.vector_store %arg7[%13, %c0_2], %12 {strides = array<i32>} : memref<8x40xf32, #tpu.memory_space<vmem>>, vector<1x40xf32>,
    %c1_i32 = arith.constant 1 : i32
    %15 = arith.addi %0, %c1_i32 : i32
    %16 = arith.index_cast %15 : i32 to index
    %17 = memref.load %arg1[%16] : memref<8xi32, #tpu.memory_space<smem>>
    %18 = arith.addi %0, %c1_i32 : i32
    %19 = arith.index_cast %18 : i32 to index
    %20 = memref.load %arg2[%19] : memref<8xi32, #tpu.memory_space<smem>>
    %21 = arith.index_cast %17 : i32 to index
    %c0_3 = arith.constant 0 : index
    %22 = vector.load %arg3[%21, %c0_3] : memref<32x24xf32, #tpu.memory_space<vmem>>, vector<1x24xf32>
    %23 = arith.index_cast %c1_i32 : i32 to index
    %c0_4 = arith.constant 0 : index
    %24 = vector.load %arg6[%23, %c0_4] : memref<8x24xf32, #tpu.memory_space<vmem>>, vector<1x24xf32>
    tpu.vector_store %arg6[%23, %c0_4], %22 {strides = array<i32>} : memref<8x24xf32, #tpu.memory_space<vmem>>, vector<1x24xf32>,
    %25 = arith.index_cast %20 : i32 to index
    %c0_5 = arith.constant 0 : index
    %26 = vector.load %arg4[%25, %c0_5] : memref<64x40xf32, #tpu.memory_space<vmem>>, vector<1x40xf32>
    %27 = arith.index_cast %c1_i32 : i32 to index
    %c0_6 = arith.constant 0 : index
    %28 = vector.load %arg7[%27, %c0_6] : memref<8x40xf32, #tpu.memory_space<vmem>>, vector<1x40xf32>
    tpu.vector_store %arg7[%27, %c0_6], %26 {strides = array<i32>} : memref<8x40xf32, #tpu.memory_space<vmem>>, vector<1x40xf32>,
    %c2_i32 = arith.constant 2 : i32
    %29 = arith.addi %0, %c2_i32 : i32
    %30 = arith.index_cast %29 : i32 to index
    %31 = memref.load %arg1[%30] : memref<8xi32, #tpu.memory_space<smem>>
    %32 = arith.addi %0, %c2_i32 : i32
    %33 = arith.index_cast %32 : i32 to index
    %34 = memref.load %arg2[%33] : memref<8xi32, #tpu.memory_space<smem>>
    %35 = arith.index_cast %31 : i32 to index
    %c0_7 = arith.constant 0 : index
    %36 = vector.load %arg3[%35, %c0_7] : memref<32x24xf32, #tpu.memory_space<vmem>>, vector<1x24xf32>
    %37 = arith.index_cast %c2_i32 : i32 to index
    %c0_8 = arith.constant 0 : index
    %38 = vector.load %arg6[%37, %c0_8] : memref<8x24xf32, #tpu.memory_space<vmem>>, vector<1x24xf32>
    tpu.vector_store %arg6[%37, %c0_8], %36 {strides = array<i32>} : memref<8x24xf32, #tpu.memory_space<vmem>>, vector<1x24xf32>,
    %39 = arith.index_cast %34 : i32 to index
    %c0_9 = arith.constant 0 : index
    %40 = vector.load %arg4[%39, %c0_9] : memref<64x40xf32, #tpu.memory_space<vmem>>, vector<1x40xf32>
    %41 = arith.index_cast %c2_i32 : i32 to index
    %c0_10 = arith.constant 0 : index
    %42 = vector.load %arg7[%41, %c0_10] : memref<8x40xf32, #tpu.memory_space<vmem>>, vector<1x40xf32>
    tpu.vector_store %arg7[%41, %c0_10], %40 {strides = array<i32>} : memref<8x40xf32, #tpu.memory_space<vmem>>, vector<1x40xf32>,
    %c3_i32 = arith.constant 3 : i32
    %43 = arith.addi %0, %c3_i32 : i32
    %44 = arith.index_cast %43 : i32 to index
    %45 = memref.load %arg1[%44] : memref<8xi32, #tpu.memory_space<smem>>
    %46 = arith.addi %0, %c3_i32 : i32
    %47 = arith.index_cast %46 : i32 to index
    %48 = memref.load %arg2[%47] : memref<8xi32, #tpu.memory_space<smem>>
    %49 = arith.index_cast %45 : i32 to index
    %c0_11 = arith.constant 0 : index
    %50 = vector.load %arg3[%49, %c0_11] : memref<32x24xf32, #tpu.memory_space<vmem>>, vector<1x24xf32>
    %51 = arith.index_cast %c3_i32 : i32 to index
    %c0_12 = arith.constant 0 : index
    %52 = vector.load %arg6[%51, %c0_12] : memref<8x24xf32, #tpu.memory_space<vmem>>, vector<1x24xf32>
    tpu.vector_store %arg6[%51, %c0_12], %50 {strides = array<i32>} : memref<8x24xf32, #tpu.memory_space<vmem>>, vector<1x24xf32>,
    %53 = arith.index_cast %48 : i32 to index
    %c0_13 = arith.constant 0 : index
    %54 = vector.load %arg4[%53, %c0_13] : memref<64x40xf32, #tpu.memory_space<vmem>>, vector<1x40xf32>
    %55 = arith.index_cast %c3_i32 : i32 to index
    %c0_14 = arith.constant 0 : index
    %56 = vector.load %arg7[%55, %c0_14] : memref<8x40xf32, #tpu.memory_space<vmem>>, vector<1x40xf32>
    tpu.vector_store %arg7[%55, %c0_14], %54 {strides = array<i32>} : memref<8x40xf32, #tpu.memory_space<vmem>>, vector<1x40xf32>,
    %c4_i32 = arith.constant 4 : i32
    %57 = arith.addi %0, %c4_i32 : i32
    %58 = arith.index_cast %57 : i32 to index
    %59 = memref.load %arg1[%58] : memref<8xi32, #tpu.memory_space<smem>>
    %60 = arith.addi %0, %c4_i32 : i32
    %61 = arith.index_cast %60 : i32 to index
    %62 = memref.load %arg2[%61] : memref<8xi32, #tpu.memory_space<smem>>
    %63 = arith.index_cast %59 : i32 to index
    %c0_15 = arith.constant 0 : index
    %64 = vector.load %arg3[%63, %c0_15] : memref<32x24xf32, #tpu.memory_space<vmem>>, vector<1x24xf32>
    %65 = arith.index_cast %c4_i32 : i32 to index
    %c0_16 = arith.constant 0 : index
    %66 = vector.load %arg6[%65, %c0_16] : memref<8x24xf32, #tpu.memory_space<vmem>>, vector<1x24xf32>
    tpu.vector_store %arg6[%65, %c0_16], %64 {strides = array<i32>} : memref<8x24xf32, #tpu.memory_space<vmem>>, vector<1x24xf32>,
    %67 = arith.index_cast %62 : i32 to index
    %c0_17 = arith.constant 0 : index
    %68 = vector.load %arg4[%67, %c0_17] : memref<64x40xf32, #tpu.memory_space<vmem>>, vector<1x40xf32>
    %69 = arith.index_cast %c4_i32 : i32 to index
    %c0_18 = arith.constant 0 : index
    %70 = vector.load %arg7[%69, %c0_18] : memref<8x40xf32, #tpu.memory_space<vmem>>, vector<1x40xf32>
    tpu.vector_store %arg7[%69, %c0_18], %68 {strides = array<i32>} : memref<8x40xf32, #tpu.memory_space<vmem>>, vector<1x40xf32>,
    %c5_i32 = arith.constant 5 : i32
    %71 = arith.addi %0, %c5_i32 : i32
    %72 = arith.index_cast %71 : i32 to index
    %73 = memref.load %arg1[%72] : memref<8xi32, #tpu.memory_space<smem>>
    %74 = arith.addi %0, %c5_i32 : i32
    %75 = arith.index_cast %74 : i32 to index
    %76 = memref.load %arg2[%75] : memref<8xi32, #tpu.memory_space<smem>>
    %77 = arith.index_cast %73 : i32 to index
    %c0_19 = arith.constant 0 : index
    %78 = vector.load %arg3[%77, %c0_19] : memref<32x24xf32, #tpu.memory_space<vmem>>, vector<1x24xf32>
    %79 = arith.index_cast %c5_i32 : i32 to index
    %c0_20 = arith.constant 0 : index
    %80 = vector.load %arg6[%79, %c0_20] : memref<8x24xf32, #tpu.memory_space<vmem>>, vector<1x24xf32>
    tpu.vector_store %arg6[%79, %c0_20], %78 {strides = array<i32>} : memref<8x24xf32, #tpu.memory_space<vmem>>, vector<1x24xf32>,
    %81 = arith.index_cast %76 : i32 to index
    %c0_21 = arith.constant 0 : index
    %82 = vector.load %arg4[%81, %c0_21] : memref<64x40xf32, #tpu.memory_space<vmem>>, vector<1x40xf32>
    %83 = arith.index_cast %c5_i32 : i32 to index
    %c0_22 = arith.constant 0 : index
    %84 = vector.load %arg7[%83, %c0_22] : memref<8x40xf32, #tpu.memory_space<vmem>>, vector<1x40xf32>
    tpu.vector_store %arg7[%83, %c0_22], %82 {strides = array<i32>} : memref<8x40xf32, #tpu.memory_space<vmem>>, vector<1x40xf32>,
    %c6_i32 = arith.constant 6 : i32
    %85 = arith.addi %0, %c6_i32 : i32
    %86 = arith.index_cast %85 : i32 to index
    %87 = memref.load %arg1[%86] : memref<8xi32, #tpu.memory_space<smem>>
    %88 = arith.addi %0, %c6_i32 : i32
    %89 = arith.index_cast %88 : i32 to index
    %90 = memref.load %arg2[%89] : memref<8xi32, #tpu.memory_space<smem>>
    %91 = arith.index_cast %87 : i32 to index
    %c0_23 = arith.constant 0 : index
    %92 = vector.load %arg3[%91, %c0_23] : memref<32x24xf32, #tpu.memory_space<vmem>>, vector<1x24xf32>
    %93 = arith.index_cast %c6_i32 : i32 to index
    %c0_24 = arith.constant 0 : index
    %94 = vector.load %arg6[%93, %c0_24] : memref<8x24xf32, #tpu.memory_space<vmem>>, vector<1x24xf32>
    tpu.vector_store %arg6[%93, %c0_24], %92 {strides = array<i32>} : memref<8x24xf32, #tpu.memory_space<vmem>>, vector<1x24xf32>,
    %95 = arith.index_cast %90 : i32 to index
    %c0_25 = arith.constant 0 : index
    %96 = vector.load %arg4[%95, %c0_25] : memref<64x40xf32, #tpu.memory_space<vmem>>, vector<1x40xf32>
    %97 = arith.index_cast %c6_i32 : i32 to index
    %c0_26 = arith.constant 0 : index
    %98 = vector.load %arg7[%97, %c0_26] : memref<8x40xf32, #tpu.memory_space<vmem>>, vector<1x40xf32>
    tpu.vector_store %arg7[%97, %c0_26], %96 {strides = array<i32>} : memref<8x40xf32, #tpu.memory_space<vmem>>, vector<1x40xf32>,
    %c7_i32 = arith.constant 7 : i32
    %99 = arith.addi %0, %c7_i32 : i32
    %100 = arith.index_cast %99 : i32 to index
    %101 = memref.load %arg1[%100] : memref<8xi32, #tpu.memory_space<smem>>
    %102 = arith.addi %0, %c7_i32 : i32
    %103 = arith.index_cast %102 : i32 to index
    %104 = memref.load %arg2[%103] : memref<8xi32, #tpu.memory_space<smem>>
    %105 = arith.index_cast %101 : i32 to index
    %c0_27 = arith.constant 0 : index
    %106 = vector.load %arg3[%105, %c0_27] : memref<32x24xf32, #tpu.memory_space<vmem>>, vector<1x24xf32>
    %107 = arith.index_cast %c7_i32 : i32 to index
    %c0_28 = arith.constant 0 : index
    %108 = vector.load %arg6[%107, %c0_28] : memref<8x24xf32, #tpu.memory_space<vmem>>, vector<1x24xf32>
    tpu.vector_store %arg6[%107, %c0_28], %106 {strides = array<i32>} : memref<8x24xf32, #tpu.memory_space<vmem>>, vector<1x24xf32>,
    %109 = arith.index_cast %104 : i32 to index
    %c0_29 = arith.constant 0 : index
    %110 = vector.load %arg4[%109, %c0_29] : memref<64x40xf32, #tpu.memory_space<vmem>>, vector<1x40xf32>
    %111 = arith.index_cast %c7_i32 : i32 to index
    %c0_30 = arith.constant 0 : index
    %112 = vector.load %arg7[%111, %c0_30] : memref<8x40xf32, #tpu.memory_space<vmem>>, vector<1x40xf32>
    tpu.vector_store %arg7[%111, %c0_30], %110 {strides = array<i32>} : memref<8x40xf32, #tpu.memory_space<vmem>>, vector<1x40xf32>,
    %c8_i32_31 = arith.constant 8 : i32
    %c0_32 = arith.constant 0 : index
    %c0_33 = arith.constant 0 : index
    %113 = vector.load %arg6[%c0_32, %c0_33] : memref<8x24xf32, #tpu.memory_space<vmem>>, vector<8x24xf32>
    %c0_34 = arith.constant 0 : index
    %c0_35 = arith.constant 0 : index
    %114 = vector.load %arg7[%c0_34, %c0_35] : memref<8x40xf32, #tpu.memory_space<vmem>>, vector<8x40xf32>
    %115 = vector.extract_strided_slice %113 {offsets = [0, 16], sizes = [8, 8], strides = [1, 1]} : vector<8x24xf32> to vector<8x8xf32>
    %116 = vector.extract_strided_slice %114 {offsets = [0, 32], sizes = [8, 8], strides = [1, 1]} : vector<8x40xf32> to vector<8x8xf32>
    %117 = arith.mulf %115, %116 : vector<8x8xf32>
    %cst = arith.constant dense<0.000000e+00> : vector<8xf32>
    %118 = vector.multi_reduction <add>, %117, %cst [1] : vector<8x8xf32> to vector<8xf32>
    %119 = vector.shape_cast %118 : vector<8xf32> to vector<8x1xf32>
    %c0_36 = arith.constant 0 : index
    %c0_37 = arith.constant 0 : index
    %120 = vector.load %arg5[%c0_36, %c0_37] : memref<8x128xf32, #tpu.memory_space<vmem>>, vector<8x24xf32>
    tpu.vector_store %arg5[%c0_36, %c0_37], %113 {strides = array<i32>} : memref<8x128xf32, #tpu.memory_space<vmem>>, vector<8x24xf32>,
    %c0_38 = arith.constant 0 : index
    %c24 = arith.constant 24 : index
    %121 = vector.load %arg5[%c0_38, %c24] : memref<8x128xf32, #tpu.memory_space<vmem>>, vector<8x40xf32>
    tpu.vector_store %arg5[%c0_38, %c24], %114 {strides = array<i32>} : memref<8x128xf32, #tpu.memory_space<vmem>>, vector<8x40xf32>,
    %c0_39 = arith.constant 0 : index
    %c64 = arith.constant 64 : index
    %122 = vector.load %arg5[%c0_39, %c64] : memref<8x128xf32, #tpu.memory_space<vmem>>, vector<8x1xf32>
    tpu.vector_store %arg5[%c0_39, %c64], %119 {strides = array<i32>} : memref<8x128xf32, #tpu.memory_space<vmem>>, vector<8x1xf32>,
    %cst_40 = arith.constant 0.000000e+00 : f32
    %123 = vector.broadcast %cst_40 : f32 to vector<8x63xf32>
    %c0_41 = arith.constant 0 : index
    %c65 = arith.constant 65 : index
    %124 = vector.load %arg5[%c0_41, %c65] : memref<8x128xf32, #tpu.memory_space<vmem>>, vector<8x63xf32>
    tpu.vector_store %arg5[%c0_41, %c65], %123 {strides = array<i32>} : memref<8x128xf32, #tpu.memory_space<vmem>>, vector<8x63xf32>,
    return
  }
  func.func @transform_0(%arg0: i32, %arg1: memref<8xi32, #tpu.memory_space<smem>>, %arg2: memref<8xi32, #tpu.memory_space<smem>>) -> (i32, i32) {
    %c0_i32 = arith.constant 0 : i32
    %c0_i32_0 = arith.constant 0 : i32
    %c0_i32_1 = arith.constant 0 : i32
    return %c0_i32, %c0_i32_0 : i32, i32
  }
  func.func @transform_1(%arg0: i32, %arg1: memref<8xi32, #tpu.memory_space<smem>>, %arg2: memref<8xi32, #tpu.memory_space<smem>>) -> (i32, i32) {
    %c0_i32 = arith.constant 0 : i32
    %c0_i32_0 = arith.constant 0 : i32
    %c0_i32_1 = arith.constant 0 : i32
    return %c0_i32, %c0_i32_0 : i32, i32
  }
  func.func @transform_2(%arg0: i32, %arg1: memref<8xi32, #tpu.memory_space<smem>>, %arg2: memref<8xi32, #tpu.memory_space<smem>>) -> (i32, i32) {
    %c0_i32 = arith.constant 0 : i32
    %c0_i32_0 = arith.constant 0 : i32
    return %arg0, %c0_i32 : i32, i32
  }
}

</mosaic_0001>

<llo_original>
// kernel: tpu_custom_call.1
$region0: #{tpu_custom_call.1}
  #allocation0 [shape = 'u32[]', space=smem, size = 0x4, offset = 0x4, fixed_abs, tag = 'smem constant byte address 0x4 - core index']
  #allocation1 [shape = 'u32[144,128]{1,0:T(1,128)}', space=vmem, size = 0x12000, scoped, tag = 'internal scratch']
  #allocation2 [shape = 'f32[8,24]{1,0:T(8,128)}', space=vmem, size = 0x1000, scoped, tag = 'scratch operand']
  #allocation3 [shape = 'f32[8,40]{1,0:T(8,128)}', space=vmem, size = 0x1000, scoped, tag = 'scratch operand']
  #allocation4 [shape = 's32[1]{0}', space=sflag, size = 0x4, scoped, tag = 'scoped memory for tpu_custom_call.1']
  #allocation5 [shape = 'u8[512]{0}', space=smem, size = 0x200, scoped, tag = 'prefetched SMEM operand 0']
  #allocation6 [shape = 'u8[512]{0}', space=smem, size = 0x200, scoped, tag = 'prefetched SMEM operand 1']
  %s0 = inlined_call_operand.vmem [shape: s32[8], index: 0, kind: input, shape index: {}]
  %s1 = inlined_call_operand.vmem [shape: s32[8], index: 1, kind: input, shape index: {}]
  %s2 = inlined_call_operand.vmem [shape: f32[32,24], index: 2, kind: input, shape index: {}]
  %s3 = inlined_call_operand.vmem [shape: f32[64,40], index: 3, kind: input, shape index: {}]
  %s4 = inlined_call_operand.hbm [shape: f32[8,128], index: 4, kind: output, shape index: {}]
  %s5 = sld [smem:[#allocation0]]
  $region18: #{tpu_custom_call.1} parent=0
    _
  %s7 = ssub.s32 1, %s5
  %s8 = scalar_select 0, %s7, %s5
  %s9 = sshll.u32 %s0, 4
  %s10 = int_to_ptr.vmem [resolvable:$true] %s9
  %12 = dma.vmem_to_smem %s10, 16, [#allocation5], [#allocation4]
  %s13 = sshll.u32 %s1, 4
  %s14 = int_to_ptr.vmem [resolvable:$true] %s13
  %16 = dma.vmem_to_smem %s14, 16, [#allocation6], [#allocation4]
  %17 = dma.done [#allocation4], 32
  %18 = sfence
  $region1: #{tpu_custom_call.1} parent=0
    #allocation7 [shape = 'u8[4096]{0}', space=vmem, size = 0x1000, scoped, tag = 'output window, operand 0, single buffered']
    #allocation8 [shape = 's32[1]{0}', space=sflag, size = 0x4, scoped, tag = 'scoped memory for tpu_custom_call.1']
    %19 = vsyncpa [#allocation8], 0
    // Predicated region
    $region2: #{tpu_custom_call.1} parent=1 // pred_check
      _
    $region3: #{tpu_custom_call.1} parent=1 // pred_check_branch
      %21 = sbr.rel (0) target = $region5
    $region4: #{tpu_custom_call.1} parent=1 // pred_region
      _
    $region5: #{tpu_custom_call.1} parent=1 // pred_fallthru
      _
    // Predicated region
    $region6: #{tpu_custom_call.1} parent=1 // pred_check
      _
    $region7: #{tpu_custom_call.1} parent=1 // pred_check_branch
      %23 = sbr.rel (0) target = $region9
    $region8: #{tpu_custom_call.1} parent=1 // pred_region
      _
    $region9: #{tpu_custom_call.1} parent=1 // pred_fallthru
      _
    %s24 = smul.u32 0, 8
    %s25 = sld [smem:[#allocation5 + %s24]]
    %s26 = sld [smem:[#allocation6 + %s24]]
    %s27 = scalar_lea.vmem %s2, %s25
    %v28 = vld [vmem:[%s27] sm:$0x1]
    %vm29 = vcmask 188416
    %30 = vst.msk [vmem:[#allocation2] sm:$0x1] %vm29, %v28
    %s31 = scalar_lea.vmem %s3, %s26
    %v32 = vld [vmem:[%s31] sm:$0x1]
    %vm33 = vcmask 319488
    %34 = vst.msk [vmem:[#allocation3] sm:$0x1] %vm33, %v32
    %s35 = sadd.s32 %s24, 1
    %s36 = sld [smem:[#allocation5 + %s35]]
    %s37 = sld [smem:[#allocation6 + %s35]]
    %s38 = scalar_lea.vmem %s2, %s36
    %v39 = vld [vmem:[%s38] sm:$0x1]
    %40 = vst.msk [vmem:[#allocation2 + $0x1] sm:$0x1] %vm29, %v39
    %s41 = scalar_lea.vmem %s3, %s37
    %v42 = vld [vmem:[%s41] sm:$0x1]
    %43 = vst.msk [vmem:[#allocation3 + $0x1] sm:$0x1] %vm33, %v42
    %s44 = sadd.s32 %s24, 2
    %s45 = sld [smem:[#allocation5 + %s44]]
    %s46 = sld [smem:[#allocation6 + %s44]]
    %s47 = scalar_lea.vmem %s2, %s45
    %v48 = vld [vmem:[%s47] sm:$0x1]
    %49 = vst.msk [vmem:[#allocation2 + $0x2] sm:$0x1] %vm29, %v48
    %s50 = scalar_lea.vmem %s3, %s46
    %v51 = vld [vmem:[%s50] sm:$0x1]
    %52 = vst.msk [vmem:[#allocation3 + $0x2] sm:$0x1] %vm33, %v51
    %s53 = sadd.s32 %s24, 3
    %s54 = sld [smem:[#allocation5 + %s53]]
    %s55 = sld [smem:[#allocation6 + %s53]]
    %s56 = scalar_lea.vmem %s2, %s54
    %v57 = vld [vmem:[%s56] sm:$0x1]
    %58 = vst.msk [vmem:[#allocation2 + $0x3] sm:$0x1] %vm29, %v57
    %s59 = scalar_lea.vmem %s3, %s55
    %v60 = vld [vmem:[%s59] sm:$0x1]
    %61 = vst.msk [vmem:[#allocation3 + $0x3] sm:$0x1] %vm33, %v60
    %s62 = sadd.s32 %s24, 4
    %s63 = sld [smem:[#allocation5 + %s62]]
    %s64 = sld [smem:[#allocation6 + %s62]]
    %s65 = scalar_lea.vmem %s2, %s63
    %v66 = vld [vmem:[%s65] sm:$0x1]
    %67 = vst.msk [vmem:[#allocation2 + $0x4] sm:$0x1] %vm29, %v66
    %s68 = scalar_lea.vmem %s3, %s64
    %v69 = vld [vmem:[%s68] sm:$0x1]
    %70 = vst.msk [vmem:[#allocation3 + $0x4] sm:$0x1] %vm33, %v69
    %s71 = sadd.s32 %s24, 5
    %s72 = sld [smem:[#allocation5 + %s71]]
    %s73 = sld [smem:[#allocation6 + %s71]]
    %s74 = scalar_lea.vmem %s2, %s72
    %v75 = vld [vmem:[%s74] sm:$0x1]
    %76 = vst.msk [vmem:[#allocation2 + $0x5] sm:$0x1] %vm29, %v75
    %s77 = scalar_lea.vmem %s3, %s73
    %v78 = vld [vmem:[%s77] sm:$0x1]
    %79 = vst.msk [vmem:[#allocation3 + $0x5] sm:$0x1] %vm33, %v78
    %s80 = sadd.s32 %s24, 6
    %s81 = sld [smem:[#allocation5 + %s80]]
    %s82 = sld [smem:[#allocation6 + %s80]]
    %s83 = scalar_lea.vmem %s2, %s81
    %v84 = vld [vmem:[%s83] sm:$0x1]
    %85 = vst.msk [vmem:[#allocation2 + $0x6] sm:$0x1] %vm29, %v84
    %s86 = scalar_lea.vmem %s3, %s82
    %v87 = vld [vmem:[%s86] sm:$0x1]
    %88 = vst.msk [vmem:[#allocation3 + $0x6] sm:$0x1] %vm33, %v87
    %s89 = sadd.s32 %s24, 7
    %s90 = sld [smem:[#allocation5 + %s89]]
    %s91 = sld [smem:[#allocation6 + %s89]]
    %s92 = scalar_lea.vmem %s2, %s90
    %v93 = vld [vmem:[%s92] sm:$0x1]
    %94 = vst.msk [vmem:[#allocation2 + $0x7] sm:$0x1] %vm29, %v93
    %s95 = scalar_lea.vmem %s3, %s91
    %v96 = vld [vmem:[%s95] sm:$0x1]
    %97 = vst.msk [vmem:[#allocation3 + $0x7] sm:$0x1] %vm33, %v96
    %v98 = vld [vmem:[#allocation2] sm:$0xff]
    %v99 = vld [vmem:[#allocation3] sm:$0xff]
    %101 = vrot.lane.b32.xlu0 %v99, 112
    %v102 = vpop.permute.xlu0 %101
    %v104 = vmul.f32 %v98, %v102
    %106 = vrot.lane.b32.xlu0 %v104, 112
    %v107 = vpop.permute.xlu0 %106
    %vm109 = vcmask 64512
    %v110 = vsel %vm109, %v107, 0.0
    %111 = vadd.xlane.f32.xlu0 %v110
    %v112 = vpop.xlane.xlu0 %111
    %vm113 = vcmask 195584
    %114 = vst.msk [vmem:[#allocation7] sm:$0xff] %vm113, %v98
    %115 = vrot.lane.b32.xlu0 %v99, 24
    %v116 = vpop.permute.xlu0 %115
    %vm118 = vcmask 523456
    %119 = vst.msk [vmem:[#allocation7] sm:$0xff] %vm118, %v116
    %vm120 = vcmask 531968
    %121 = vst.msk [vmem:[#allocation7] sm:$0xff] %vm120, %v112
    %vm122 = vcmask 1048072
    %123 = vst.msk [vmem:[#allocation7] sm:$0xff] %vm122, 0.0
    // Predicated region
    $region10: #{tpu_custom_call.1} parent=1 // pred_check
      _
    $region11: #{tpu_custom_call.1} parent=1 // pred_check_branch
      %125 = sbr.rel (0) target = $region13
    $region12: #{tpu_custom_call.1} parent=1 // pred_region
      %s127 = ssub.s32 128, 128
      %128 = vsyncadd [#allocation8], %s127
      %s130 = sshll.u32 [#allocation7], 4
      %s131 = int_to_ptr.vmem [resolvable:$true] %s130
      %133 = dma.vmem_to_hbm [thread:$0]  %s131, 128, %s4, [#allocation8]
    $region13: #{tpu_custom_call.1} parent=1 // pred_fallthru
      _
    // Predicated region
    $region14: #{tpu_custom_call.1} parent=1 // pred_check
      _
    $region15: #{tpu_custom_call.1} parent=1 // pred_check_branch
      %135 = sbr.rel (0) target = $region17
    $region16: #{tpu_custom_call.1} parent=1 // pred_region
      %136 = dma.done [#allocation8], 128
    $region17: #{tpu_custom_call.1} parent=1 // pred_fallthru
      _
    %137 = vsyncpa [#allocation8], 1

</llo_original>
